<compile_context>
chip_gen: v5e
topology: v5e:2x2
jax: 0.10.0
libtpu: 0.0.40
codegen_flags: <defaults>
</compile_context>

<pallas_src>
import jax
import jax.numpy as jnp
from jax.experimental import pallas as pl
from jax.experimental.pallas import tpu as pltpu

EPS = 1e-5          # BatchNorm1d default eps
CP = 128            # every channel dim is zero-padded to one full lane tile


# ------------------------------ Pallas kernel -------------------------------

def make_forward_kernel(B, L, ks, layers):
    BL = B * L

    def roll_L(h3, off):
        # h3: (B, L, CP) f32.  Returns y with y[:, t, :] = h3[:, (t + off) % L, :].
        # Static circular shift of the whole batch at once (O(1) per tap, independent of B).
        off = off % L
        if off == 0:
            return h3
        return jnp.concatenate([h3[:, off:, :], h3[:, :off, :]], axis=1)

    def kernel(xs_ref, w_ref, c_ref, o_ref):
        # xs_ref: (B*L, CP) bf16        -- block-0 conv1 taps, pre-stacked on lanes outside.
        # w_ref : (n_slabs, CP, CP) bf16 -- all weights (BN scale folded, zero padded).
        # c_ref : (8, CP) f32           -- packed BN shifts / residual bias / decoder bias.
        # o_ref : (B, CP) f32           -- lane-dense decoder output (sliced outside).

        def shift_row(r):
            return c_ref[pl.ds(r, 1), :]                        # (1, CP) f32 broadcast row

        def conv(h3, slab0, dil):
            # Circular dilated conv as a sum over ks rolled taps; bf16 MXU operands,
            # f32 accumulation.  Weight slab j already has the BN scale folded in.
            left = dil * (ks - 1) // 2
            acc = None
            for j in range(ks):
                tap = roll_L(h3, j * dil - left).reshape(BL, CP).astype(jnp.bfloat16)
                d = jnp.dot(tap, w_ref[slab0 + j], preferred_element_type=jnp.float32)
                acc = d if acc is None else acc + d
            return acc                                          # (BL, CP) f32

        slab, row = 0, 0
        xs = xs_ref[...]                                        # (BL, CP) bf16

        # ------------------------------ block 0 ------------------------------
        # conv1: taps pre-stacked outside -> one matmul against the stacked slab.
        a = jnp.dot(xs, w_ref[slab], preferred_element_type=jnp.float32)
        a = jnp.maximum(a + shift_row(row), 0.0)                # BN(eval) shift + ReLU
        slab += 1; row += 1
        # conv2 -> BN shift -> ReLU
        o = conv(a.reshape(B, L, CP), slab, 1)
        o = jnp.maximum(o + shift_row(row), 0.0)
        slab += ks; row += 1
        # residual 1x1 conv (or identity selection when c_in == c_out), read off the
        # zero-offset tap lanes of the stacked input; other lanes hit zero weight rows.
        res = jnp.dot(xs, w_ref[slab], preferred_element_type=jnp.float32) + shift_row(row)
        slab += 1; row += 1
        h = o + res                                             # trailing ReLU dropped: o >= 0

        # ------------------------- blocks 1 .. layers-1 -----------------------
        for i in range(1, layers):
            dil = 2 ** i
            h3 = h.reshape(B, L, CP)
            a = conv(h3, slab, dil)
            a = jnp.maximum(a + shift_row(row), 0.0)
            slab += ks; row += 1
            o = conv(a.reshape(B, L, CP), slab, dil)
            o = jnp.maximum(o + shift_row(row), 0.0)
            slab += ks; row += 1
            h = o + h                                           # identity residual (c_in == c_out)

        # ---------------- decoder: mean over L + linear (fused) ---------------
        pooled = jnp.sum(h.reshape(B, L, CP), axis=1) * (1.0 / L)        # (B, CP) sublane reduce
        out = jnp.dot(pooled.astype(jnp.bfloat16), w_ref[slab],
                      preferred_element_type=jnp.float32) + shift_row(row)
        o_ref[...] = out                                        # full-lane (B, 128) store

    return kernel


def forward(x, params):
    """x: (B, L, dim_in) channels-last float input."""
    B, L, dim_in = x.shape
    ks, layers = params["ks"], params["layers"]
    output_size = params["output_size"]
    assert L % 8 == 0, "L must be a multiple of 8 for the cheap (B*L,C)<->(B,L,C) reshapes"

    # Block-0 conv1 taps pre-stacked on the lane axis outside the kernel (free XLA work):
    # lane block j of xs holds x[:, (t + j - left) % L, :]  (block-0 dilation is 1).
    left = (ks - 1) // 2
    x32 = x.astype(jnp.float32)
    taps = [jnp.roll(x32, -(j - left), axis=1) for j in range(ks)]
    xs = jnp.concatenate(taps, axis=-1).reshape(B * L, ks * dim_in)
    xs = jnp.pad(xs, ((0, 0), (0, CP - ks * dim_in))).astype(jnp.bfloat16)

    vmem = pl.BlockSpec(memory_space=pltpu.MemorySpace.VMEM)    # whole array, VMEM resident
    out = pl.pallas_call(
        make_forward_kernel(B, L, ks, layers),
        out_shape=jax.ShapeDtypeStruct((B, CP), jnp.float32),
        in_specs=[vmem, vmem, vmem],
        out_specs=vmem,
        # Explicit VMEM budget: total resident footprint here is < 1 MiB, ample headroom on
        # v5e/v6e (128 MiB) and v7x (64 MiB).  Scaling B*L up => switch to an L-tiled grid.
        compiler_params=pltpu.CompilerParams(vmem_limit_bytes=16 * 1024 * 1024),
    )(xs, params["weights"], params["consts"])
    return out[:, :output_size]


# ------------------------- deterministic parameters -------------------------

def init_params(key, dim_in, dim_out, layers, ks, output_size):
    """Builds the packed kernel parameters and a matching pure-JAX reference set."""
    hdim = dim_out * 2
    assert max(ks * dim_in, hdim, dim_out, output_size) <= CP

    def bf_round(w):                      # weights are used as bf16 by both kernel and reference
        return w.astype(jnp.bfloat16).astype(jnp.float32)

    def pad_slab(w, row_off=0):
        s = jnp.zeros((CP, CP), jnp.float32)
        return s.at[row_off:row_off + w.shape[0], :w.shape[1]].set(w)

    def pad_row(v):
        return jnp.zeros((CP,), jnp.float32).at[:v.shape[0]].set(v)

    slabs, crows, ref_blocks = [], [], []
    j0 = (ks - 1) // 2                                   # zero-offset tap index

    for i in range(layers):
        c_in = dim_in if i == 0 else dim_out
        c_out = dim_out
        dil = 2 ** i
        key, k1, k2, k3, k4, k5, k6, k7, k8 = jax.random.split(key, 9)
        # conv weights in PyTorch layout (out, in, ks), bias=False
        w1 = 0.3 * jax.random.normal(k1, (hdim, c_in, ks), jnp.float32)
        w2 = 0.3 * jax.random.normal(k2, (c_out, hdim, ks), jnp.float32)
        g1 = 1.0 + 0.1 * jax.random.normal(k3, (hdim,), jnp.float32)
        b1 = 0.1 * jax.random.normal(k4, (hdim,), jnp.float32)
        g2 = 1.0 + 0.1 * jax.random.normal(k5, (c_out,), jnp.float32)
        b2 = 0.1 * jax.random.normal(k6, (c_out,), jnp.float32)
        # BatchNorm1d eval with fresh stats (mean=0, var=1): scale folded into weights, shift kept.
        s1, sh1 = g1 / jnp.sqrt(1.0 + EPS), b1
        s2, sh2 = g2 / jnp.sqrt(1.0 + EPS), b2
        # per-tap (c_in, c_out) weights, BN scale folded into columns, bf16-rounded
        w1_taps = [bf_round(w1[:, :, j].T * s1[None, :]) for j in range(ks)]
        w2_taps = [bf_round(w2[:, :, j].T * s2[None, :]) for j in range(ks)]
        has_res = c_in != c_out

        if i == 0:
            # conv1: all ks taps collapsed into one stacked slab (input taps are pre-stacked).
            stacked = jnp.zeros((CP, CP), jnp.float32)
            for j in range(ks):
                stacked = stacked.at[j * c_in:(j + 1) * c_in, :hdim].set(w1_taps[j])
            slabs.append(stacked); crows.append(pad_row(sh1))
            slabs += [pad_slab(w) for w in w2_taps]; crows.append(pad_row(sh2))
            # residual slab acts on the stacked input -> rows sit at the zero-offset tap lanes.
            if has_res:
                wres = bf_round(0.3 * jax.random.normal(k7, (c_out, c_in), jnp.float32).T)
                bres = 0.1 * jax.random.normal(k8, (c_out,), jnp.float32)
                slabs.append(pad_slab(wres, row_off=j0 * c_in)); crows.append(pad_row(bres))
                res_mode = "conv"
            else:
                wres = jnp.eye(c_in, dtype=jnp.float32)
                bres = jnp.zeros((c_out,), jnp.float32)
                slabs.append(pad_slab(wres, row_off=j0 * c_in)); crows.append(pad_row(bres))
                res_mode = "bf16_id"     # identity residual passes through the bf16 stacked input
        else:
            slabs += [pad_slab(w) for w in w1_taps]; crows.append(pad_row(sh1))
            slabs += [pad_slab(w) for w in w2_taps]; crows.append(pad_row(sh2))
            wres, bres, res_mode = None, None, "id"

        ref_blocks.append(dict(dil=dil, w1=w1_taps, w2=w2_taps, sh1=sh1, sh2=sh2,
                               res_mode=res_mode, wres=wres, bres=bres))

    key, kd1, kd2 = jax.random.split(key, 3)
    dec_w = bf_round(0.3 * jax.random.normal(kd1, (output_size, dim_out), jnp.float32).T)
    dec_b = 0.1 * jax.random.normal(kd2, (output_size,), jnp.float32)
    slabs.append(pad_slab(dec_w)); crows.append(pad_row(dec_b))

    n_rows = ((len(crows) + 7) // 8) * 8
    crows += [jnp.zeros((CP,), jnp.float32)] * (n_rows - len(crows))
    params = dict(weights=jnp.stack(slabs).astype(jnp.bfloat16),
                  consts=jnp.stack(crows),
                  ks=ks, layers=layers, output_size=output_size)
    ref = dict(blocks=ref_blocks, dec_w=dec_w, dec_b=dec_b)
    return params, ref


# ---------------------------- pure-JAX reference ----------------------------

def forward_ref(x, ref, *, ks):
    """Mirrors the kernel's precision path: bf16 matmul operands, f32 accumulation,
    BN scale folded into the (bf16-rounded) weights."""
    bf = lambda z: z.astype(jnp.bfloat16).astype(jnp.float32)
    h = x.astype(jnp.float32)
    for p in ref["blocks"]:
        dil = p["dil"]
        left = dil * (ks - 1) // 2

        def conv(z, taps):
            out = 0.0
            for j, w in enumerate(taps):
                zj = jnp.roll(z, -(j * dil - left), axis=1)    # z[:, (t + j*dil - left) % L, :]
                out = out + jnp.einsum("blc,cd->bld", bf(zj), w)
            return out

        a = jnp.maximum(conv(h, p["w1"]) + p["sh1"], 0.0)
        o = jnp.maximum(conv(a, p["w2"]) + p["sh2"], 0.0)
        if p["res_mode"] == "conv":
            res = jnp.einsum("blc,cd->bld", bf(h), p["wres"]) + p["bres"]
        elif p["res_mode"] == "bf16_id":
            res = bf(h)
        else:
            res = h
        h = jnp.maximum(o, 0.0) + res      # == o + res since o >= 0
    pooled = jnp.mean(h, axis=1)
    return jnp.einsum("bc,cd->bd", bf(pooled), ref["dec_w"]) + ref["dec_b"]


# ----------------------------------- main -----------------------------------

if __name__ == "__main__":
    # GB_Linear_Classifier(dim_in=4, dim_out=8, layers=2, ks=3, output_size=5,
    #                      dropout=0.0, max_len=16), inference mode.
    dim_in, dim_out, layers, ks, output_size = 4, 8, 2, 3, 5
    B, L = 2, 16

    key = jax.random.PRNGKey(0)
    key, kx = jax.random.split(key)
    x = jax.random.normal(kx, (B, L, dim_in), jnp.float32)      # (batch, seq, features)

    params, ref_params = init_params(key, dim_in, dim_out, layers, ks, output_size)

    out = forward(x, params)
    out = jax.block_until_ready(out)

    ref = forward_ref(x, ref_params, ks=ks)
    assert out.shape == (B, output_size), out.shape
    max_diff = float(jnp.max(jnp.abs(out - ref)))
    assert bool(jnp.allclose(out, ref, atol=3e-2, rtol=3e-2)), f"max abs diff {max_diff}"

    print("KERNEL_OK")
</pallas_src>

<mosaic_0001>
module attributes {stable_mosaic.version = 11 : i64} {
  func.func @kernel(%arg0: memref<32x128xbf16, #tpu.memory_space<vmem>>, %arg1: memref<12x128x128xbf16, #tpu.memory_space<vmem>>, %arg2: memref<8x128xf32, #tpu.memory_space<vmem>>, %arg3: memref<2x128xf32, #tpu.memory_space<vmem>>) attributes {dimension_semantics = [], scalar_prefetch = 0 : i64, scratch_operands = 0 : i64, tpu.core_type = #tpu.core_type<tc>} {
    %c0 = arith.constant 0 : index
    %c0_0 = arith.constant 0 : index
    %0 = vector.load %arg0[%c0, %c0_0] : memref<32x128xbf16, #tpu.memory_space<vmem>>, vector<32x128xbf16>
    %c0_1 = arith.constant 0 : index
    %c0_2 = arith.constant 0 : index
    %c0_3 = arith.constant 0 : index
    %1 = vector.load %arg1[%c0_1, %c0_2, %c0_3] : memref<12x128x128xbf16, #tpu.memory_space<vmem>>, vector<1x128x128xbf16>
    %2 = vector.shape_cast %1 : vector<1x128x128xbf16> to vector<128x128xbf16>
    %cst = arith.constant dense<0.000000e+00> : vector<32x128xf32>
    %3 = tpu.matmul %0, %2, %cst {dimension_numbers = #tpu.dot_dimension_numbers<[1], [0], [0], [1], [0, 0, 1, 1], [], []>} : vector<32x128xbf16>, vector<128x128xbf16>, vector<32x128xf32> -> vector<32x128xf32>
    %c0_4 = arith.constant 0 : index
    %c0_5 = arith.constant 0 : index
    %4 = vector.load %arg2[%c0_4, %c0_5] : memref<8x128xf32, #tpu.memory_space<vmem>>, vector<1x128xf32>
    %5 = vector.broadcast %4 : vector<1x128xf32> to vector<32x128xf32>
    %6 = arith.addf %3, %5 : vector<32x128xf32>
    %cst_6 = arith.constant 0.000000e+00 : f32
    %7 = vector.broadcast %cst_6 : f32 to vector<32x128xf32>
    %8 = arith.maximumf %6, %7 : vector<32x128xf32>
    %9 = vector.shape_cast %8 : vector<32x128xf32> to vector<2x16x128xf32>
    %10 = vector.extract_strided_slice %9 {offsets = [0, 15, 0], sizes = [2, 1, 128], strides = [1, 1, 1]} : vector<2x16x128xf32> to vector<2x1x128xf32>
    %11 = vector.extract_strided_slice %9 {offsets = [0, 0, 0], sizes = [2, 15, 128], strides = [1, 1, 1]} : vector<2x16x128xf32> to vector<2x15x128xf32>
    %12 = tpu.concatenate %10, %11 in 1 : vector<2x1x128xf32>, vector<2x15x128xf32> -> vector<2x16x128xf32>
    %13 = vector.shape_cast %12 : vector<2x16x128xf32> to vector<32x128xf32>
    %14 = arith.truncf %13 : vector<32x128xf32> to vector<32x128xbf16>
    %c1 = arith.constant 1 : index
    %c0_7 = arith.constant 0 : index
    %c0_8 = arith.constant 0 : index
    %15 = vector.load %arg1[%c1, %c0_7, %c0_8] : memref<12x128x128xbf16, #tpu.memory_space<vmem>>, vector<1x128x128xbf16>
    %16 = vector.shape_cast %15 : vector<1x128x128xbf16> to vector<128x128xbf16>
    %cst_9 = arith.constant dense<0.000000e+00> : vector<32x128xf32>
    %17 = tpu.matmul %14, %16, %cst_9 {dimension_numbers = #tpu.dot_dimension_numbers<[1], [0], [0], [1], [0, 0, 1, 1], [], []>} : vector<32x128xbf16>, vector<128x128xbf16>, vector<32x128xf32> -> vector<32x128xf32>
    %18 = vector.shape_cast %9 : vector<2x16x128xf32> to vector<32x128xf32>
    %19 = arith.truncf %18 : vector<32x128xf32> to vector<32x128xbf16>
    %c2 = arith.constant 2 : index
    %c0_10 = arith.constant 0 : index
    %c0_11 = arith.constant 0 : index
    %20 = vector.load %arg1[%c2, %c0_10, %c0_11] : memref<12x128x128xbf16, #tpu.memory_space<vmem>>, vector<1x128x128xbf16>
    %21 = vector.shape_cast %20 : vector<1x128x128xbf16> to vector<128x128xbf16>
    %cst_12 = arith.constant dense<0.000000e+00> : vector<32x128xf32>
    %22 = tpu.matmul %19, %21, %cst_12 {dimension_numbers = #tpu.dot_dimension_numbers<[1], [0], [0], [1], [0, 0, 1, 1], [], []>} : vector<32x128xbf16>, vector<128x128xbf16>, vector<32x128xf32> -> vector<32x128xf32>
    %23 = arith.addf %17, %22 : vector<32x128xf32>
    %24 = vector.extract_strided_slice %9 {offsets = [0, 1, 0], sizes = [2, 15, 128], strides = [1, 1, 1]} : vector<2x16x128xf32> to vector<2x15x128xf32>
    %25 = vector.extract_strided_slice %9 {offsets = [0, 0, 0], sizes = [2, 1, 128], strides = [1, 1, 1]} : vector<2x16x128xf32> to vector<2x1x128xf32>
    %26 = tpu.concatenate %24, %25 in 1 : vector<2x15x128xf32>, vector<2x1x128xf32> -> vector<2x16x128xf32>
    %27 = vector.shape_cast %26 : vector<2x16x128xf32> to vector<32x128xf32>
    %28 = arith.truncf %27 : vector<32x128xf32> to vector<32x128xbf16>
    %c3 = arith.constant 3 : index
    %c0_13 = arith.constant 0 : index
    %c0_14 = arith.constant 0 : index
    %29 = vector.load %arg1[%c3, %c0_13, %c0_14] : memref<12x128x128xbf16, #tpu.memory_space<vmem>>, vector<1x128x128xbf16>
    %30 = vector.shape_cast %29 : vector<1x128x128xbf16> to vector<128x128xbf16>
    %cst_15 = arith.constant dense<0.000000e+00> : vector<32x128xf32>
    %31 = tpu.matmul %28, %30, %cst_15 {dimension_numbers = #tpu.dot_dimension_numbers<[1], [0], [0], [1], [0, 0, 1, 1], [], []>} : vector<32x128xbf16>, vector<128x128xbf16>, vector<32x128xf32> -> vector<32x128xf32>
    %32 = arith.addf %23, %31 : vector<32x128xf32>
    %c1_16 = arith.constant 1 : index
    %c0_17 = arith.constant 0 : index
    %33 = vector.load %arg2[%c1_16, %c0_17] : memref<8x128xf32, #tpu.memory_space<vmem>>, vector<1x128xf32>
    %34 = vector.broadcast %33 : vector<1x128xf32> to vector<32x128xf32>
    %35 = arith.addf %32, %34 : vector<32x128xf32>
    %cst_18 = arith.constant 0.000000e+00 : f32
    %36 = vector.broadcast %cst_18 : f32 to vector<32x128xf32>
    %37 = arith.maximumf %35, %36 : vector<32x128xf32>
    %c4 = arith.constant 4 : index
    %c0_19 = arith.constant 0 : index
    %c0_20 = arith.constant 0 : index
    %38 = vector.load %arg1[%c4, %c0_19, %c0_20] : memref<12x128x128xbf16, #tpu.memory_space<vmem>>, vector<1x128x128xbf16>
    %39 = vector.shape_cast %38 : vector<1x128x128xbf16> to vector<128x128xbf16>
    %cst_21 = arith.constant dense<0.000000e+00> : vector<32x128xf32>
    %40 = tpu.matmul %0, %39, %cst_21 {dimension_numbers = #tpu.dot_dimension_numbers<[1], [0], [0], [1], [0, 0, 1, 1], [], []>} : vector<32x128xbf16>, vector<128x128xbf16>, vector<32x128xf32> -> vector<32x128xf32>
    %c2_22 = arith.constant 2 : index
    %c0_23 = arith.constant 0 : index
    %41 = vector.load %arg2[%c2_22, %c0_23] : memref<8x128xf32, #tpu.memory_space<vmem>>, vector<1x128xf32>
    %42 = vector.broadcast %41 : vector<1x128xf32> to vector<32x128xf32>
    %43 = arith.addf %40, %42 : vector<32x128xf32>
    %44 = arith.addf %37, %43 : vector<32x128xf32>
    %45 = vector.shape_cast %44 : vector<32x128xf32> to vector<2x16x128xf32>
    %46 = vector.extract_strided_slice %45 {offsets = [0, 14, 0], sizes = [2, 2, 128], strides = [1, 1, 1]} : vector<2x16x128xf32> to vector<2x2x128xf32>
    %47 = vector.extract_strided_slice %45 {offsets = [0, 0, 0], sizes = [2, 14, 128], strides = [1, 1, 1]} : vector<2x16x128xf32> to vector<2x14x128xf32>
    %48 = tpu.concatenate %46, %47 in 1 : vector<2x2x128xf32>, vector<2x14x128xf32> -> vector<2x16x128xf32>
    %49 = vector.shape_cast %48 : vector<2x16x128xf32> to vector<32x128xf32>
    %50 = arith.truncf %49 : vector<32x128xf32> to vector<32x128xbf16>
    %c5 = arith.constant 5 : index
    %c0_24 = arith.constant 0 : index
    %c0_25 = arith.constant 0 : index
    %51 = vector.load %arg1[%c5, %c0_24, %c0_25] : memref<12x128x128xbf16, #tpu.memory_space<vmem>>, vector<1x128x128xbf16>
    %52 = vector.shape_cast %51 : vector<1x128x128xbf16> to vector<128x128xbf16>
    %cst_26 = arith.constant dense<0.000000e+00> : vector<32x128xf32>
    %53 = tpu.matmul %50, %52, %cst_26 {dimension_numbers = #tpu.dot_dimension_numbers<[1], [0], [0], [1], [0, 0, 1, 1], [], []>} : vector<32x128xbf16>, vector<128x128xbf16>, vector<32x128xf32> -> vector<32x128xf32>
    %54 = vector.shape_cast %45 : vector<2x16x128xf32> to vector<32x128xf32>
    %55 = arith.truncf %54 : vector<32x128xf32> to vector<32x128xbf16>
    %c6 = arith.constant 6 : index
    %c0_27 = arith.constant 0 : index
    %c0_28 = arith.constant 0 : index
    %56 = vector.load %arg1[%c6, %c0_27, %c0_28] : memref<12x128x128xbf16, #tpu.memory_space<vmem>>, vector<1x128x128xbf16>
    %57 = vector.shape_cast %56 : vector<1x128x128xbf16> to vector<128x128xbf16>
    %cst_29 = arith.constant dense<0.000000e+00> : vector<32x128xf32>
    %58 = tpu.matmul %55, %57, %cst_29 {dimension_numbers = #tpu.dot_dimension_numbers<[1], [0], [0], [1], [0, 0, 1, 1], [], []>} : vector<32x128xbf16>, vector<128x128xbf16>, vector<32x128xf32> -> vector<32x128xf32>
    %59 = arith.addf %53, %58 : vector<32x128xf32>
    %60 = vector.extract_strided_slice %45 {offsets = [0, 2, 0], sizes = [2, 14, 128], strides = [1, 1, 1]} : vector<2x16x128xf32> to vector<2x14x128xf32>
    %61 = vector.extract_strided_slice %45 {offsets = [0, 0, 0], sizes = [2, 2, 128], strides = [1, 1, 1]} : vector<2x16x128xf32> to vector<2x2x128xf32>
    %62 = tpu.concatenate %60, %61 in 1 : vector<2x14x128xf32>, vector<2x2x128xf32> -> vector<2x16x128xf32>
    %63 = vector.shape_cast %62 : vector<2x16x128xf32> to vector<32x128xf32>
    %64 = arith.truncf %63 : vector<32x128xf32> to vector<32x128xbf16>
    %c7 = arith.constant 7 : index
    %c0_30 = arith.constant 0 : index
    %c0_31 = arith.constant 0 : index
    %65 = vector.load %arg1[%c7, %c0_30, %c0_31] : memref<12x128x128xbf16, #tpu.memory_space<vmem>>, vector<1x128x128xbf16>
    %66 = vector.shape_cast %65 : vector<1x128x128xbf16> to vector<128x128xbf16>
    %cst_32 = arith.constant dense<0.000000e+00> : vector<32x128xf32>
    %67 = tpu.matmul %64, %66, %cst_32 {dimension_numbers = #tpu.dot_dimension_numbers<[1], [0], [0], [1], [0, 0, 1, 1], [], []>} : vector<32x128xbf16>, vector<128x128xbf16>, vector<32x128xf32> -> vector<32x128xf32>
    %68 = arith.addf %59, %67 : vector<32x128xf32>
    %c3_33 = arith.constant 3 : index
    %c0_34 = arith.constant 0 : index
    %69 = vector.load %arg2[%c3_33, %c0_34] : memref<8x128xf32, #tpu.memory_space<vmem>>, vector<1x128xf32>
    %70 = vector.broadcast %69 : vector<1x128xf32> to vector<32x128xf32>
    %71 = arith.addf %68, %70 : vector<32x128xf32>
    %cst_35 = arith.constant 0.000000e+00 : f32
    %72 = vector.broadcast %cst_35 : f32 to vector<32x128xf32>
    %73 = arith.maximumf %71, %72 : vector<32x128xf32>
    %74 = vector.shape_cast %73 : vector<32x128xf32> to vector<2x16x128xf32>
    %75 = vector.extract_strided_slice %74 {offsets = [0, 14, 0], sizes = [2, 2, 128], strides = [1, 1, 1]} : vector<2x16x128xf32> to vector<2x2x128xf32>
    %76 = vector.extract_strided_slice %74 {offsets = [0, 0, 0], sizes = [2, 14, 128], strides = [1, 1, 1]} : vector<2x16x128xf32> to vector<2x14x128xf32>
    %77 = tpu.concatenate %75, %76 in 1 : vector<2x2x128xf32>, vector<2x14x128xf32> -> vector<2x16x128xf32>
    %78 = vector.shape_cast %77 : vector<2x16x128xf32> to vector<32x128xf32>
    %79 = arith.truncf %78 : vector<32x128xf32> to vector<32x128xbf16>
    %c8 = arith.constant 8 : index
    %c0_36 = arith.constant 0 : index
    %c0_37 = arith.constant 0 : index
    %80 = vector.load %arg1[%c8, %c0_36, %c0_37] : memref<12x128x128xbf16, #tpu.memory_space<vmem>>, vector<1x128x128xbf16>
    %81 = vector.shape_cast %80 : vector<1x128x128xbf16> to vector<128x128xbf16>
    %cst_38 = arith.constant dense<0.000000e+00> : vector<32x128xf32>
    %82 = tpu.matmul %79, %81, %cst_38 {dimension_numbers = #tpu.dot_dimension_numbers<[1], [0], [0], [1], [0, 0, 1, 1], [], []>} : vector<32x128xbf16>, vector<128x128xbf16>, vector<32x128xf32> -> vector<32x128xf32>
    %83 = vector.shape_cast %74 : vector<2x16x128xf32> to vector<32x128xf32>
    %84 = arith.truncf %83 : vector<32x128xf32> to vector<32x128xbf16>
    %c9 = arith.constant 9 : index
    %c0_39 = arith.constant 0 : index
    %c0_40 = arith.constant 0 : index
    %85 = vector.load %arg1[%c9, %c0_39, %c0_40] : memref<12x128x128xbf16, #tpu.memory_space<vmem>>, vector<1x128x128xbf16>
    %86 = vector.shape_cast %85 : vector<1x128x128xbf16> to vector<128x128xbf16>
    %cst_41 = arith.constant dense<0.000000e+00> : vector<32x128xf32>
    %87 = tpu.matmul %84, %86, %cst_41 {dimension_numbers = #tpu.dot_dimension_numbers<[1], [0], [0], [1], [0, 0, 1, 1], [], []>} : vector<32x128xbf16>, vector<128x128xbf16>, vector<32x128xf32> -> vector<32x128xf32>
    %88 = arith.addf %82, %87 : vector<32x128xf32>
    %89 = vector.extract_strided_slice %74 {offsets = [0, 2, 0], sizes = [2, 14, 128], strides = [1, 1, 1]} : vector<2x16x128xf32> to vector<2x14x128xf32>
    %90 = vector.extract_strided_slice %74 {offsets = [0, 0, 0], sizes = [2, 2, 128], strides = [1, 1, 1]} : vector<2x16x128xf32> to vector<2x2x128xf32>
    %91 = tpu.concatenate %89, %90 in 1 : vector<2x14x128xf32>, vector<2x2x128xf32> -> vector<2x16x128xf32>
    %92 = vector.shape_cast %91 : vector<2x16x128xf32> to vector<32x128xf32>
    %93 = arith.truncf %92 : vector<32x128xf32> to vector<32x128xbf16>
    %c10 = arith.constant 10 : index
    %c0_42 = arith.constant 0 : index
    %c0_43 = arith.constant 0 : index
    %94 = vector.load %arg1[%c10, %c0_42, %c0_43] : memref<12x128x128xbf16, #tpu.memory_space<vmem>>, vector<1x128x128xbf16>
    %95 = vector.shape_cast %94 : vector<1x128x128xbf16> to vector<128x128xbf16>
    %cst_44 = arith.constant dense<0.000000e+00> : vector<32x128xf32>
    %96 = tpu.matmul %93, %95, %cst_44 {dimension_numbers = #tpu.dot_dimension_numbers<[1], [0], [0], [1], [0, 0, 1, 1], [], []>} : vector<32x128xbf16>, vector<128x128xbf16>, vector<32x128xf32> -> vector<32x128xf32>
    %97 = arith.addf %88, %96 : vector<32x128xf32>
    %c4_45 = arith.constant 4 : index
    %c0_46 = arith.constant 0 : index
    %98 = vector.load %arg2[%c4_45, %c0_46] : memref<8x128xf32, #tpu.memory_space<vmem>>, vector<1x128xf32>
    %99 = vector.broadcast %98 : vector<1x128xf32> to vector<32x128xf32>
    %100 = arith.addf %97, %99 : vector<32x128xf32>
    %cst_47 = arith.constant 0.000000e+00 : f32
    %101 = vector.broadcast %cst_47 : f32 to vector<32x128xf32>
    %102 = arith.maximumf %100, %101 : vector<32x128xf32>
    %103 = arith.addf %102, %44 : vector<32x128xf32>
    %104 = vector.shape_cast %103 : vector<32x128xf32> to vector<2x16x128xf32>
    %cst_48 = arith.constant dense<0.000000e+00> : vector<2x128xf32>
    %105 = vector.multi_reduction <add>, %104, %cst_48 [1] : vector<2x16x128xf32> to vector<2x128xf32>
    %cst_49 = arith.constant 6.250000e-02 : f32
    %106 = vector.broadcast %cst_49 : f32 to vector<2x128xf32>
    %107 = arith.mulf %105, %106 : vector<2x128xf32>
    %108 = arith.truncf %107 : vector<2x128xf32> to vector<2x128xbf16>
    %c11 = arith.constant 11 : index
    %c0_50 = arith.constant 0 : index
    %c0_51 = arith.constant 0 : index
    %109 = vector.load %arg1[%c11, %c0_50, %c0_51] : memref<12x128x128xbf16, #tpu.memory_space<vmem>>, vector<1x128x128xbf16>
    %110 = vector.shape_cast %109 : vector<1x128x128xbf16> to vector<128x128xbf16>
    %cst_52 = arith.constant dense<0.000000e+00> : vector<2x128xf32>
    %111 = tpu.matmul %108, %110, %cst_52 {dimension_numbers = #tpu.dot_dimension_numbers<[1], [0], [0], [1], [0, 0, 1, 1], [], []>} : vector<2x128xbf16>, vector<128x128xbf16>, vector<2x128xf32> -> vector<2x128xf32>
    %c5_53 = arith.constant 5 : index
    %c0_54 = arith.constant 0 : index
    %112 = vector.load %arg2[%c5_53, %c0_54] : memref<8x128xf32, #tpu.memory_space<vmem>>, vector<1x128xf32>
    %113 = vector.broadcast %112 : vector<1x128xf32> to vector<2x128xf32>
    %114 = arith.addf %111, %113 : vector<2x128xf32>
    %c0_55 = arith.constant 0 : index
    %c0_56 = arith.constant 0 : index
    %115 = vector.load %arg3[%c0_55, %c0_56] : memref<2x128xf32, #tpu.memory_space<vmem>>, vector<2x128xf32>
    tpu.vector_store %arg3[%c0_55, %c0_56], %114 {strides = array<i32>} : memref<2x128xf32, #tpu.memory_space<vmem>>, vector<2x128xf32>,
    return
  }
}

</mosaic_0001>

<llo_original>
// kernel: tpu_custom_call.1
$region0: #{tpu_custom_call.1}
  #allocation0 [shape = 'u32[]', space=smem, size = 0x4, offset = 0x4, fixed_abs, tag = 'smem constant byte address 0x4 - core index']
  #allocation1 [shape = 'u32[72,128]{1,0:T(1,128)}', space=vmem, size = 0x9000, scoped, tag = 'internal scratch']
  %s0 = inlined_call_operand.hbm [shape: bf16[32,128], index: 0, kind: input, shape index: {}]
  %s1 = inlined_call_operand.hbm [shape: bf16[12,128,128], index: 1, kind: input, shape index: {}]
  %s2 = inlined_call_operand.hbm [shape: f32[8,128], index: 2, kind: input, shape index: {}]
  %s3 = inlined_call_operand.hbm [shape: f32[2,128], index: 3, kind: output, shape index: {}]
  %s4 = sld [smem:[#allocation0]]
  $region34: #{tpu_custom_call.1} parent=0
    _
  %s6 = ssub.s32 1, %s4
  %s7 = scalar_select 0, %s6, %s4
  $region1: #{tpu_custom_call.1} parent=0
    #allocation2 [shape = 'u8[8192]{0}', space=vmem, size = 0x2000, scoped, tag = 'input window, operand 0, single buffered']
    #allocation3 [shape = 's32[1]{0}', space=sflag, size = 0x4, scoped, tag = 'scoped memory for tpu_custom_call.1']
    #allocation4 [shape = 's32[1]{0}', space=sflag, size = 0x4, scoped, tag = 'scoped memory for tpu_custom_call.1']
    #allocation5 [shape = 'u8[393216]{0}', space=vmem, size = 0x60000, scoped, tag = 'input window, operand 1, single buffered']
    #allocation6 [shape = 's32[1]{0}', space=sflag, size = 0x4, scoped, tag = 'scoped memory for tpu_custom_call.1']
    #allocation7 [shape = 'u8[4096]{0}', space=vmem, size = 0x1000, scoped, tag = 'input window, operand 2, single buffered']
    #allocation8 [shape = 'u8[1024]{0}', space=vmem, size = 0x400, scoped, tag = 'output window, operand 0, single buffered']
    %8 = vsyncpa [#allocation3], 0
    %9 = vsyncpa [#allocation6], 0
    %10 = vsyncpa [#allocation4], 0
    // Predicated region
    $region2: #{tpu_custom_call.1} parent=1 // pred_check
      _
    $region3: #{tpu_custom_call.1} parent=1 // pred_check_branch
      %12 = sbr.rel (0) target = $region5
    $region4: #{tpu_custom_call.1} parent=1 // pred_region
      %14 = vsyncadd [#allocation3], 0
      %s15 = sshll.u32 %s0, 4
      %s16 = int_to_ptr.hbm [resolvable:$true] %s15
      %s17 = sshll.u32 [#allocation2], 4
      %s18 = int_to_ptr.vmem [resolvable:$true] %s17
      %23 = dma.hbm_to_vmem [thread:$0]  %s16, 256, %s18, [#allocation3], 64, 64, 4
    $region5: #{tpu_custom_call.1} parent=1 // pred_fallthru
      _
    // Predicated region
    $region6: #{tpu_custom_call.1} parent=1 // pred_check
      _
    $region7: #{tpu_custom_call.1} parent=1 // pred_check_branch
      %25 = sbr.rel (0) target = $region9
    $region8: #{tpu_custom_call.1} parent=1 // pred_region
      %27 = vsyncadd [#allocation6], 0
      %s28 = sshll.u32 %s1, 4
      %s29 = int_to_ptr.hbm [resolvable:$true] %s28
      %s30 = sshll.u32 [#allocation5], 4
      %s31 = int_to_ptr.vmem [resolvable:$true] %s30
      %36 = dma.hbm_to_vmem [thread:$0]  %s29, 12288, %s31, [#allocation6], 64, 64, 4
    $region9: #{tpu_custom_call.1} parent=1 // pred_fallthru
      _
    // Predicated region
    $region10: #{tpu_custom_call.1} parent=1 // pred_check
      _
    $region11: #{tpu_custom_call.1} parent=1 // pred_check_branch
      %38 = sbr.rel (0) target = $region13
    $region12: #{tpu_custom_call.1} parent=1 // pred_region
      %40 = vsyncadd [#allocation6], 0
      %s42 = sshll.u32 %s2, 4
      %s43 = int_to_ptr.hbm [resolvable:$true] %s42
      %s44 = sshll.u32 [#allocation7], 4
      %s45 = int_to_ptr.vmem [resolvable:$true] %s44
      %47 = dma.hbm_to_vmem [thread:$0]  %s43, 128, %s45, [#allocation6]
    $region13: #{tpu_custom_call.1} parent=1 // pred_fallthru
      _
    // Predicated region
    $region14: #{tpu_custom_call.1} parent=1 // pred_check
      _
    $region15: #{tpu_custom_call.1} parent=1 // pred_check_branch
      %49 = sbr.rel (0) target = $region17
    $region16: #{tpu_custom_call.1} parent=1 // pred_region
      %51 = dma.done [#allocation3], 256
    $region17: #{tpu_custom_call.1} parent=1 // pred_fallthru
      _
    // Predicated region
    $region18: #{tpu_custom_call.1} parent=1 // pred_check
      _
    $region19: #{tpu_custom_call.1} parent=1 // pred_check_branch
      %53 = sbr.rel (0) target = $region21
    $region20: #{tpu_custom_call.1} parent=1 // pred_region
      %55 = dma.done [#allocation6], 12288
    $region21: #{tpu_custom_call.1} parent=1 // pred_fallthru
      _
    // Predicated region
    $region22: #{tpu_custom_call.1} parent=1 // pred_check
      _
    $region23: #{tpu_custom_call.1} parent=1 // pred_check_branch
      %57 = sbr.rel (0) target = $region25
    $region24: #{tpu_custom_call.1} parent=1 // pred_region
      %59 = dma.done [#allocation6], 128
    $region25: #{tpu_custom_call.1} parent=1 // pred_fallthru
      _
    %v60 = vld [vmem:[#allocation2] sm:$0xf]
    %v61 = vld [vmem:[#allocation2 + $0x4] sm:$0xf]
    %v62 = vld [vmem:[#allocation2 + $0x8] sm:$0xf]
    %v63 = vld [vmem:[#allocation2 + $0xc] sm:$0xf]
    %v64 = vld [vmem:[#allocation5] sm:$0xf]
    %v65 = vld [vmem:[#allocation5 + $0x4] sm:$0xf]
    %v66 = vld [vmem:[#allocation5 + $0x8] sm:$0xf]
    %v67 = vld [vmem:[#allocation5 + $0xc] sm:$0xf]
    %v68 = vld [vmem:[#allocation5 + $0x10] sm:$0xf]
    %v69 = vld [vmem:[#allocation5 + $0x14] sm:$0xf]
    %v70 = vld [vmem:[#allocation5 + $0x18] sm:$0xf]
    %v71 = vld [vmem:[#allocation5 + $0x1c] sm:$0xf]
    %v72 = vld [vmem:[#allocation5 + $0x20] sm:$0xf]
    %v73 = vld [vmem:[#allocation5 + $0x24] sm:$0xf]
    %v74 = vld [vmem:[#allocation5 + $0x28] sm:$0xf]
    %v75 = vld [vmem:[#allocation5 + $0x2c] sm:$0xf]
    %v76 = vld [vmem:[#allocation5 + $0x30] sm:$0xf]
    %v77 = vld [vmem:[#allocation5 + $0x34] sm:$0xf]
    %v78 = vld [vmem:[#allocation5 + $0x38] sm:$0xf]
    %v79 = vld [vmem:[#allocation5 + $0x3c] sm:$0xf]
    %v80 = vld [vmem:[#allocation7] sm:$0x1]
    %v81 = vperm.slane %v80, 0
    %v86 = vunpack.c.l.b16 %v60
    %v87 = vunpack.c.l.b16 %v61
    %v88 = vunpack.c.l.b16 %v62
    %v89 = vunpack.c.l.b16 %v63
    %v90 = vpack.c.b16 %v87, %v86
    %v91 = vpack.c.b16 %v89, %v88
    %v110 = vunpack.c.l.b16 %v64
    %v111 = vunpack.c.l.b16 %v65
    %v112 = vunpack.c.l.b16 %v66
    %v113 = vunpack.c.l.b16 %v67
    %v114 = vunpack.c.l.b16 %v68
    %v115 = vunpack.c.l.b16 %v69
    %v116 = vunpack.c.l.b16 %v70
    %v117 = vunpack.c.l.b16 %v71
    %v118 = vunpack.c.l.b16 %v72
    %v119 = vunpack.c.l.b16 %v73
    %v120 = vunpack.c.l.b16 %v74
    %v121 = vunpack.c.l.b16 %v75
    %v122 = vunpack.c.l.b16 %v76
    %v123 = vunpack.c.l.b16 %v77
    %v124 = vunpack.c.l.b16 %v78
    %v125 = vunpack.c.l.b16 %v79
    %v126 = vpack.c.b16 %v111, %v110
    %v127 = vpack.c.b16 %v113, %v112
    %v128 = vpack.c.b16 %v115, %v114
    %v129 = vpack.c.b16 %v117, %v116
    %v130 = vpack.c.b16 %v119, %v118
    %v131 = vpack.c.b16 %v121, %v120
    %v132 = vpack.c.b16 %v123, %v122
    %v133 = vpack.c.b16 %v125, %v124
    %142 = vmatpush.bf16.msra.mxu0 %v133
    %143 = vmatpush.bf16.msra.mxu0 %v132
    %144 = vmatpush.bf16.msra.mxu0 %v131
    %145 = vmatpush.bf16.msra.mxu0 %v130
    %146 = vmatpush.bf16.msra.mxu0 %v129
    %147 = vmatpush.bf16.msra.mxu0 %v128
    %148 = vmatpush.bf16.msra.mxu0 %v127
    %149 = vmatpush.bf16.msra.mxu0 %v126
    %150 = vmatmul.bf16.gmra.mxu0 %v90
    %v151 = vpop.f32.mrf.mxu0
    %v152 = vadd.f32 %v81, %v151
    %v153 = vpop.f32.mrf.mxu0
    %v154 = vadd.f32 %v81, %v153
    %155 = vmatmul.bf16.gmra.mxu0 %v91
    %v156 = vpop.f32.mrf.mxu0
    %v157 = vadd.f32 %v81, %v156
    %v158 = vpop.f32.mrf.mxu0
    %v159 = vadd.f32 %v81, %v158
    %160 = vdwg.mxu0
    %v161 = vmax.f32 %v152, 0.0
    %v162 = vmax.f32 %v154, 0.0
    %v163 = vmax.f32 %v157, 0.0
    %v164 = vmax.f32 %v159, 0.0
    %v167 = vrot.slane %v162, 7
    %v168 = vrot.slane %v164, 7
    %vm173 = vcmask 1040384
    %v174 = vrot.slane %v161, 7
    %v175 = vsel %vm173, %v174, %v167
    %v176 = vrot.slane %v163, 7
    %v177 = vsel %vm173, %v176, %v168
    %v182 = vsel %vm173, %v167, %v174
    %v183 = vsel %vm173, %v168, %v176
    %v184 = vpack.c.bf16 %v175, %v182
    %v185 = vpack.c.bf16 %v177, %v183
    %s186 = scalar_lea.vmem [#allocation5], 64
    %v187 = vld [vmem:[%s186] sm:$0xf]
    %v188 = vld [vmem:[%s186 + $0x4] sm:$0xf]
    %v189 = vld [vmem:[%s186 + $0x8] sm:$0xf]
    %v190 = vld [vmem:[%s186 + $0xc] sm:$0xf]
    %v191 = vld [vmem:[%s186 + $0x10] sm:$0xf]
    %v192 = vld [vmem:[%s186 + $0x14] sm:$0xf]
    %v193 = vld [vmem:[%s186 + $0x18] sm:$0xf]
    %v194 = vld [vmem:[%s186 + $0x1c] sm:$0xf]
    %v195 = vld [vmem:[%s186 + $0x20] sm:$0xf]
    %v196 = vld [vmem:[%s186 + $0x24] sm:$0xf]
    %v197 = vld [vmem:[%s186 + $0x28] sm:$0xf]
    %v198 = vld [vmem:[%s186 + $0x2c] sm:$0xf]
    %v199 = vld [vmem:[%s186 + $0x30] sm:$0xf]
    %v200 = vld [vmem:[%s186 + $0x34] sm:$0xf]
    %v201 = vld [vmem:[%s186 + $0x38] sm:$0xf]
    %v202 = vld [vmem:[%s186 + $0x3c] sm:$0xf]
    %v203 = vpack.c.bf16 %v162, %v161
    %v204 = vpack.c.bf16 %v164, %v163
    %s205 = scalar_lea.vmem [#allocation5], 128
    %v206 = vld [vmem:[%s205] sm:$0xf]
    %v207 = vld [vmem:[%s205 + $0x4] sm:$0xf]
    %v208 = vld [vmem:[%s205 + $0x8] sm:$0xf]
    %v209 = vld [vmem:[%s205 + $0xc] sm:$0xf]
    %v210 = vld [vmem:[%s205 + $0x10] sm:$0xf]
    %v211 = vld [vmem:[%s205 + $0x14] sm:$0xf]
    %v212 = vld [vmem:[%s205 + $0x18] sm:$0xf]
    %v213 = vld [vmem:[%s205 + $0x1c] sm:$0xf]
    %v214 = vld [vmem:[%s205 + $0x20] sm:$0xf]
    %v215 = vld [vmem:[%s205 + $0x24] sm:$0xf]
    %v216 = vld [vmem:[%s205 + $0x28] sm:$0xf]
    %v217 = vld [vmem:[%s205 + $0x2c] sm:$0xf]
    %v218 = vld [vmem:[%s205 + $0x30] sm:$0xf]
    %v219 = vld [vmem:[%s205 + $0x34] sm:$0xf]
    %v220 = vld [vmem:[%s205 + $0x38] sm:$0xf]
    %v221 = vld [vmem:[%s205 + $0x3c] sm:$0xf]
    %v238 = vunpack.c.l.b16 %v206
    %v239 = vunpack.c.l.b16 %v207
    %v240 = vunpack.c.l.b16 %v208
    %v241 = vunpack.c.l.b16 %v209
    %v242 = vunpack.c.l.b16 %v210
    %v243 = vunpack.c.l.b16 %v211
    %v244 = vunpack.c.l.b16 %v212
    %v245 = vunpack.c.l.b16 %v213
    %v246 = vunpack.c.l.b16 %v214
    %v247 = vunpack.c.l.b16 %v215
    %v248 = vunpack.c.l.b16 %v216
    %v249 = vunpack.c.l.b16 %v217
    %v250 = vunpack.c.l.b16 %v218
    %v251 = vunpack.c.l.b16 %v219
    %v252 = vunpack.c.l.b16 %v220
    %v253 = vunpack.c.l.b16 %v221
    %v254 = vpack.c.b16 %v239, %v238
    %v255 = vpack.c.b16 %v241, %v240
    %v256 = vpack.c.b16 %v243, %v242
    %v257 = vpack.c.b16 %v245, %v244
    %v258 = vpack.c.b16 %v247, %v246
    %v259 = vpack.c.b16 %v249, %v248
    %v260 = vpack.c.b16 %v251, %v250
    %v261 = vpack.c.b16 %v253, %v252
    %270 = vmatpush.bf16.msra.mxu0 %v261
    %271 = vmatpush.bf16.msra.mxu0 %v260
    %272 = vmatpush.bf16.msra.mxu0 %v259
    %273 = vmatpush.bf16.msra.mxu0 %v258
    %274 = vmatpush.bf16.msra.mxu0 %v257
    %275 = vmatpush.bf16.msra.mxu0 %v256
    %276 = vmatpush.bf16.msra.mxu0 %v255
    %277 = vmatpush.bf16.msra.mxu0 %v254
    %278 = vmatmul.bf16.gmra.mxu0 %v203
    %v279 = vpop.f32.mrf.mxu0
    %v280 = vadd.f32 0.0, %v279
    %v281 = vpop.f32.mrf.mxu0
    %v282 = vadd.f32 0.0, %v281
    %283 = vmatmul.bf16.gmra.mxu0 %v204
    %v284 = vpop.f32.mrf.mxu0
    %v285 = vadd.f32 0.0, %v284
    %v286 = vpop.f32.mrf.mxu0
    %v287 = vadd.f32 0.0, %v286
    %288 = vdwg.mxu0
    %v305 = vunpack.c.l.b16 %v187
    %v306 = vunpack.c.l.b16 %v188
    %v307 = vunpack.c.l.b16 %v189
    %v308 = vunpack.c.l.b16 %v190
    %v309 = vunpack.c.l.b16 %v191
    %v310 = vunpack.c.l.b16 %v192
    %v311 = vunpack.c.l.b16 %v193
    %v312 = vunpack.c.l.b16 %v194
    %v313 = vunpack.c.l.b16 %v195
    %v314 = vunpack.c.l.b16 %v196
    %v315 = vunpack.c.l.b16 %v197
    %v316 = vunpack.c.l.b16 %v198
    %v317 = vunpack.c.l.b16 %v199
    %v318 = vunpack.c.l.b16 %v200
    %v319 = vunpack.c.l.b16 %v201
    %v320 = vunpack.c.l.b16 %v202
    %v321 = vpack.c.b16 %v306, %v305
    %v322 = vpack.c.b16 %v308, %v307
    %v323 = vpack.c.b16 %v310, %v309
    %v324 = vpack.c.b16 %v312, %v311
    %v325 = vpack.c.b16 %v314, %v313
    %v326 = vpack.c.b16 %v316, %v315
    %v327 = vpack.c.b16 %v318, %v317
    %v328 = vpack.c.b16 %v320, %v319
    %337 = vmatpush.bf16.msra.mxu0 %v328
    %338 = vmatpush.bf16.msra.mxu0 %v327
    %339 = vmatpush.bf16.msra.mxu0 %v326
    %340 = vmatpush.bf16.msra.mxu0 %v325
    %341 = vmatpush.bf16.msra.mxu0 %v324
    %342 = vmatpush.bf16.msra.mxu0 %v323
    %343 = vmatpush.bf16.msra.mxu0 %v322
    %344 = vmatpush.bf16.msra.mxu0 %v321
    %345 = vmatmul.bf16.gmra.mxu0 %v184
    %v346 = vpop.f32.mrf.mxu0
    %v347 = vadd.f32 %v280, %v346
    %v348 = vpop.f32.mrf.mxu0
    %v349 = vadd.f32 %v282, %v348
    %350 = vmatmul.bf16.gmra.mxu0 %v185
    %v351 = vpop.f32.mrf.mxu0
    %v352 = vadd.f32 %v285, %v351
    %v353 = vpop.f32.mrf.mxu0
    %v354 = vadd.f32 %v287, %v353
    %355 = vdwg.mxu0
    %vm356 = vcmask 1046528
    %v357 = vrot.slane %v161, 1
    %v358 = vrot.slane %v162, 1
    %v359 = vsel %vm356, %v357, %v358
    %v360 = vrot.slane %v163, 1
    %v361 = vrot.slane %v164, 1
    %v362 = vsel %vm356, %v360, %v361
    %v369 = vsel %vm356, %v358, %v357
    %v370 = vsel %vm356, %v361, %v360
    %v371 = vpack.c.bf16 %v369, %v359
    %v372 = vpack.c.bf16 %v370, %v362
    %s373 = scalar_lea.vmem [#allocation5], 192
    %v374 = vld [vmem:[%s373] sm:$0xf]
    %v375 = vld [vmem:[%s373 + $0x4] sm:$0xf]
    %v376 = vld [vmem:[%s373 + $0x8] sm:$0xf]
    %v377 = vld [vmem:[%s373 + $0xc] sm:$0xf]
    %v378 = vld [vmem:[%s373 + $0x10] sm:$0xf]
    %v379 = vld [vmem:[%s373 + $0x14] sm:$0xf]
    %v380 = vld [vmem:[%s373 + $0x18] sm:$0xf]
    %v381 = vld [vmem:[%s373 + $0x1c] sm:$0xf]
    %v382 = vld [vmem:[%s373 + $0x20] sm:$0xf]
    %v383 = vld [vmem:[%s373 + $0x24] sm:$0xf]
    %v384 = vld [vmem:[%s373 + $0x28] sm:$0xf]
    %v385 = vld [vmem:[%s373 + $0x2c] sm:$0xf]
    %v386 = vld [vmem:[%s373 + $0x30] sm:$0xf]
    %v387 = vld [vmem:[%s373 + $0x34] sm:$0xf]
    %v388 = vld [vmem:[%s373 + $0x38] sm:$0xf]
    %v389 = vld [vmem:[%s373 + $0x3c] sm:$0xf]
    %v406 = vunpack.c.l.b16 %v374
    %v407 = vunpack.c.l.b16 %v375
    %v408 = vunpack.c.l.b16 %v376
    %v409 = vunpack.c.l.b16 %v377
    %v410 = vunpack.c.l.b16 %v378
    %v411 = vunpack.c.l.b16 %v379
    %v412 = vunpack.c.l.b16 %v380
    %v413 = vunpack.c.l.b16 %v381
    %v414 = vunpack.c.l.b16 %v382
    %v415 = vunpack.c.l.b16 %v383
    %v416 = vunpack.c.l.b16 %v384
    %v417 = vunpack.c.l.b16 %v385
    %v418 = vunpack.c.l.b16 %v386
    %v419 = vunpack.c.l.b16 %v387
    %v420 = vunpack.c.l.b16 %v388
    %v421 = vunpack.c.l.b16 %v389
    %v422 = vpack.c.b16 %v407, %v406
    %v423 = vpack.c.b16 %v409, %v408
    %v424 = vpack.c.b16 %v411, %v410
    %v425 = vpack.c.b16 %v413, %v412
    %v426 = vpack.c.b16 %v415, %v414
    %v427 = vpack.c.b16 %v417, %v416
    %v428 = vpack.c.b16 %v419, %v418
    %v429 = vpack.c.b16 %v421, %v420
    %438 = vmatpush.bf16.msra.mxu0 %v429
    %439 = vmatpush.bf16.msra.mxu0 %v428
    %440 = vmatpush.bf16.msra.mxu0 %v427
    %441 = vmatpush.bf16.msra.mxu0 %v426
    %442 = vmatpush.bf16.msra.mxu0 %v425
    %443 = vmatpush.bf16.msra.mxu0 %v424
    %444 = vmatpush.bf16.msra.mxu0 %v423
    %445 = vmatpush.bf16.msra.mxu0 %v422
    %446 = vmatmul.bf16.gmra.mxu0 %v371
    %v447 = vpop.f32.mrf.mxu0
    %v448 = vadd.f32 0.0, %v447
    %v449 = vpop.f32.mrf.mxu0
    %v450 = vadd.f32 0.0, %v449
    %451 = vmatmul.bf16.gmra.mxu0 %v372
    %v452 = vpop.f32.mrf.mxu0
    %v453 = vadd.f32 0.0, %v452
    %v454 = vpop.f32.mrf.mxu0
    %v455 = vadd.f32 0.0, %v454
    %456 = vdwg.mxu0
    %v457 = vadd.f32 %v347, %v448
    %v458 = vadd.f32 %v349, %v450
    %v459 = vadd.f32 %v352, %v453
    %v460 = vadd.f32 %v354, %v455
    %v461 = vld [vmem:[#allocation7 + $0x1] sm:$0x1]
    %v462 = vperm.slane %v461, 0
    %v463 = vadd.f32 %v457, %v462
    %v464 = vadd.f32 %v458, %v462
    %v465 = vadd.f32 %v459, %v462
    %v466 = vadd.f32 %v460, %v462
    %v467 = vmax.f32 %v463, 0.0
    %v468 = vmax.f32 %v464, 0.0
    %v469 = vmax.f32 %v465, 0.0
    %v470 = vmax.f32 %v466, 0.0
    %s471 = scalar_lea.vmem [#allocation5], 256
    %v472 = vld [vmem:[%s471] sm:$0xf]
    %v473 = vld [vmem:[%s471 + $0x4] sm:$0xf]
    %v474 = vld [vmem:[%s471 + $0x8] sm:$0xf]
    %v475 = vld [vmem:[%s471 + $0xc] sm:$0xf]
    %v476 = vld [vmem:[%s471 + $0x10] sm:$0xf]
    %v477 = vld [vmem:[%s471 + $0x14] sm:$0xf]
    %v478 = vld [vmem:[%s471 + $0x18] sm:$0xf]
    %v479 = vld [vmem:[%s471 + $0x1c] sm:$0xf]
    %v480 = vld [vmem:[%s471 + $0x20] sm:$0xf]
    %v481 = vld [vmem:[%s471 + $0x24] sm:$0xf]
    %v482 = vld [vmem:[%s471 + $0x28] sm:$0xf]
    %v483 = vld [vmem:[%s471 + $0x2c] sm:$0xf]
    %v484 = vld [vmem:[%s471 + $0x30] sm:$0xf]
    %v485 = vld [vmem:[%s471 + $0x34] sm:$0xf]
    %v486 = vld [vmem:[%s471 + $0x38] sm:$0xf]
    %v487 = vld [vmem:[%s471 + $0x3c] sm:$0xf]
    %v488 = vld [vmem:[#allocation7 + $0x2] sm:$0x1]
    %v489 = vperm.slane %v488, 0
    %v506 = vunpack.c.l.b16 %v472
    %v507 = vunpack.c.l.b16 %v473
    %v508 = vunpack.c.l.b16 %v474
    %v509 = vunpack.c.l.b16 %v475
    %v510 = vunpack.c.l.b16 %v476
    %v511 = vunpack.c.l.b16 %v477
    %v512 = vunpack.c.l.b16 %v478
    %v513 = vunpack.c.l.b16 %v479
    %v514 = vunpack.c.l.b16 %v480
    %v515 = vunpack.c.l.b16 %v481
    %v516 = vunpack.c.l.b16 %v482
    %v517 = vunpack.c.l.b16 %v483
    %v518 = vunpack.c.l.b16 %v484
    %v519 = vunpack.c.l.b16 %v485
    %v520 = vunpack.c.l.b16 %v486
    %v521 = vunpack.c.l.b16 %v487
    %v522 = vpack.c.b16 %v507, %v506
    %v523 = vpack.c.b16 %v509, %v508
    %v524 = vpack.c.b16 %v511, %v510
    %v525 = vpack.c.b16 %v513, %v512
    %v526 = vpack.c.b16 %v515, %v514
    %v527 = vpack.c.b16 %v517, %v516
    %v528 = vpack.c.b16 %v519, %v518
    %v529 = vpack.c.b16 %v521, %v520
    %538 = vmatpush.bf16.msra.mxu0 %v529
    %539 = vmatpush.bf16.msra.mxu0 %v528
    %540 = vmatpush.bf16.msra.mxu0 %v527
    %541 = vmatpush.bf16.msra.mxu0 %v526
    %542 = vmatpush.bf16.msra.mxu0 %v525
    %543 = vmatpush.bf16.msra.mxu0 %v524
    %544 = vmatpush.bf16.msra.mxu0 %v523
    %545 = vmatpush.bf16.msra.mxu0 %v522
    %546 = vmatmul.bf16.gmra.mxu0 %v90
    %v547 = vpop.f32.mrf.mxu0
    %v548 = vadd.f32 %v489, %v547
    %v549 = vpop.f32.mrf.mxu0
    %v550 = vadd.f32 %v489, %v549
    %551 = vmatmul.bf16.gmra.mxu0 %v91
    %v552 = vpop.f32.mrf.mxu0
    %v553 = vadd.f32 %v489, %v552
    %v554 = vpop.f32.mrf.mxu0
    %v555 = vadd.f32 %v489, %v554
    %556 = vdwg.mxu0
    %v557 = vadd.f32 %v467, %v548
    %v558 = vadd.f32 %v468, %v550
    %v559 = vadd.f32 %v469, %v553
    %v560 = vadd.f32 %v470, %v555
    %v563 = vrot.slane %v558, 6
    %v564 = vrot.slane %v560, 6
    %vm569 = vcmask 1041408
    %v570 = vrot.slane %v557, 6
    %v571 = vsel %vm569, %v570, %v563
    %v572 = vrot.slane %v559, 6
    %v573 = vsel %vm569, %v572, %v564
    %v578 = vsel %vm569, %v563, %v570
    %v579 = vsel %vm569, %v564, %v572
    %v580 = vpack.c.bf16 %v571, %v578
    %v581 = vpack.c.bf16 %v573, %v579
    %s582 = scalar_lea.vmem [#allocation5], 320
    %v583 = vld [vmem:[%s582] sm:$0xf]
    %v584 = vld [vmem:[%s582 + $0x4] sm:$0xf]
    %v585 = vld [vmem:[%s582 + $0x8] sm:$0xf]
    %v586 = vld [vmem:[%s582 + $0xc] sm:$0xf]
    %v587 = vld [vmem:[%s582 + $0x10] sm:$0xf]
    %v588 = vld [vmem:[%s582 + $0x14] sm:$0xf]
    %v589 = vld [vmem:[%s582 + $0x18] sm:$0xf]
    %v590 = vld [vmem:[%s582 + $0x1c] sm:$0xf]
    %v591 = vld [vmem:[%s582 + $0x20] sm:$0xf]
    %v592 = vld [vmem:[%s582 + $0x24] sm:$0xf]
    %v593 = vld [vmem:[%s582 + $0x28] sm:$0xf]
    %v594 = vld [vmem:[%s582 + $0x2c] sm:$0xf]
    %v595 = vld [vmem:[%s582 + $0x30] sm:$0xf]
    %v596 = vld [vmem:[%s582 + $0x34] sm:$0xf]
    %v597 = vld [vmem:[%s582 + $0x38] sm:$0xf]
    %v598 = vld [vmem:[%s582 + $0x3c] sm:$0xf]
    %v599 = vpack.c.bf16 %v558, %v557
    %v600 = vpack.c.bf16 %v560, %v559
    %s601 = scalar_lea.vmem [#allocation5], 384
    %v602 = vld [vmem:[%s601] sm:$0xf]
    %v603 = vld [vmem:[%s601 + $0x4] sm:$0xf]
    %v604 = vld [vmem:[%s601 + $0x8] sm:$0xf]
    %v605 = vld [vmem:[%s601 + $0xc] sm:$0xf]
    %v606 = vld [vmem:[%s601 + $0x10] sm:$0xf]
    %v607 = vld [vmem:[%s601 + $0x14] sm:$0xf]
    %v608 = vld [vmem:[%s601 + $0x18] sm:$0xf]
    %v609 = vld [vmem:[%s601 + $0x1c] sm:$0xf]
    %v610 = vld [vmem:[%s601 + $0x20] sm:$0xf]
    %v611 = vld [vmem:[%s601 + $0x24] sm:$0xf]
    %v612 = vld [vmem:[%s601 + $0x28] sm:$0xf]
    %v613 = vld [vmem:[%s601 + $0x2c] sm:$0xf]
    %v614 = vld [vmem:[%s601 + $0x30] sm:$0xf]
    %v615 = vld [vmem:[%s601 + $0x34] sm:$0xf]
    %v616 = vld [vmem:[%s601 + $0x38] sm:$0xf]
    %v617 = vld [vmem:[%s601 + $0x3c] sm:$0xf]
    %v634 = vunpack.c.l.b16 %v602
    %v635 = vunpack.c.l.b16 %v603
    %v636 = vunpack.c.l.b16 %v604
    %v637 = vunpack.c.l.b16 %v605
    %v638 = vunpack.c.l.b16 %v606
    %v639 = vunpack.c.l.b16 %v607
    %v640 = vunpack.c.l.b16 %v608
    %v641 = vunpack.c.l.b16 %v609
    %v642 = vunpack.c.l.b16 %v610
    %v643 = vunpack.c.l.b16 %v611
    %v644 = vunpack.c.l.b16 %v612
    %v645 = vunpack.c.l.b16 %v613
    %v646 = vunpack.c.l.b16 %v614
    %v647 = vunpack.c.l.b16 %v615
    %v648 = vunpack.c.l.b16 %v616
    %v649 = vunpack.c.l.b16 %v617
    %v650 = vpack.c.b16 %v635, %v634
    %v651 = vpack.c.b16 %v637, %v636
    %v652 = vpack.c.b16 %v639, %v638
    %v653 = vpack.c.b16 %v641, %v640
    %v654 = vpack.c.b16 %v643, %v642
    %v655 = vpack.c.b16 %v645, %v644
    %v656 = vpack.c.b16 %v647, %v646
    %v657 = vpack.c.b16 %v649, %v648
    %666 = vmatpush.bf16.msra.mxu0 %v657
    %667 = vmatpush.bf16.msra.mxu0 %v656
    %668 = vmatpush.bf16.msra.mxu0 %v655
    %669 = vmatpush.bf16.msra.mxu0 %v654
    %670 = vmatpush.bf16.msra.mxu0 %v653
    %671 = vmatpush.bf16.msra.mxu0 %v652
    %672 = vmatpush.bf16.msra.mxu0 %v651
    %673 = vmatpush.bf16.msra.mxu0 %v650
    %674 = vmatmul.bf16.gmra.mxu0 %v599
    %v675 = vpop.f32.mrf.mxu0
    %v676 = vadd.f32 0.0, %v675
    %v677 = vpop.f32.mrf.mxu0
    %v678 = vadd.f32 0.0, %v677
    %679 = vmatmul.bf16.gmra.mxu0 %v600
    %v680 = vpop.f32.mrf.mxu0
    %v681 = vadd.f32 0.0, %v680
    %v682 = vpop.f32.mrf.mxu0
    %v683 = vadd.f32 0.0, %v682
    %684 = vdwg.mxu0
    %v701 = vunpack.c.l.b16 %v583
    %v702 = vunpack.c.l.b16 %v584
    %v703 = vunpack.c.l.b16 %v585
    %v704 = vunpack.c.l.b16 %v586
    %v705 = vunpack.c.l.b16 %v587
    %v706 = vunpack.c.l.b16 %v588
    %v707 = vunpack.c.l.b16 %v589
    %v708 = vunpack.c.l.b16 %v590
    %v709 = vunpack.c.l.b16 %v591
    %v710 = vunpack.c.l.b16 %v592
    %v711 = vunpack.c.l.b16 %v593
    %v712 = vunpack.c.l.b16 %v594
    %v713 = vunpack.c.l.b16 %v595
    %v714 = vunpack.c.l.b16 %v596
    %v715 = vunpack.c.l.b16 %v597
    %v716 = vunpack.c.l.b16 %v598
    %v717 = vpack.c.b16 %v702, %v701
    %v718 = vpack.c.b16 %v704, %v703
    %v719 = vpack.c.b16 %v706, %v705
    %v720 = vpack.c.b16 %v708, %v707
    %v721 = vpack.c.b16 %v710, %v709
    %v722 = vpack.c.b16 %v712, %v711
    %v723 = vpack.c.b16 %v714, %v713
    %v724 = vpack.c.b16 %v716, %v715
    %733 = vmatpush.bf16.msra.mxu0 %v724
    %734 = vmatpush.bf16.msra.mxu0 %v723
    %735 = vmatpush.bf16.msra.mxu0 %v722
    %736 = vmatpush.bf16.msra.mxu0 %v721
    %737 = vmatpush.bf16.msra.mxu0 %v720
    %738 = vmatpush.bf16.msra.mxu0 %v719
    %739 = vmatpush.bf16.msra.mxu0 %v718
    %740 = vmatpush.bf16.msra.mxu0 %v717
    %741 = vmatmul.bf16.gmra.mxu0 %v580
    %v742 = vpop.f32.mrf.mxu0
    %v743 = vadd.f32 %v676, %v742
    %v744 = vpop.f32.mrf.mxu0
    %v745 = vadd.f32 %v678, %v744
    %746 = vmatmul.bf16.gmra.mxu0 %v581
    %v747 = vpop.f32.mrf.mxu0
    %v748 = vadd.f32 %v681, %v747
    %v749 = vpop.f32.mrf.mxu0
    %v750 = vadd.f32 %v683, %v749
    %751 = vdwg.mxu0
    %vm752 = vcmask 1045504
    %v753 = vrot.slane %v557, 2
    %v754 = vrot.slane %v558, 2
    %v755 = vsel %vm752, %v753, %v754
    %v756 = vrot.slane %v559, 2
    %v757 = vrot.slane %v560, 2
    %v758 = vsel %vm752, %v756, %v757
    %v765 = vsel %vm752, %v754, %v753
    %v766 = vsel %vm752, %v757, %v756
    %v767 = vpack.c.bf16 %v765, %v755
    %v768 = vpack.c.bf16 %v766, %v758
    %s769 = scalar_lea.vmem [#allocation5], 448
    %v770 = vld [vmem:[%s769] sm:$0xf]
    %v771 = vld [vmem:[%s769 + $0x4] sm:$0xf]
    %v772 = vld [vmem:[%s769 + $0x8] sm:$0xf]
    %v773 = vld [vmem:[%s769 + $0xc] sm:$0xf]
    %v774 = vld [vmem:[%s769 + $0x10] sm:$0xf]
    %v775 = vld [vmem:[%s769 + $0x14] sm:$0xf]
    %v776 = vld [vmem:[%s769 + $0x18] sm:$0xf]
    %v777 = vld [vmem:[%s769 + $0x1c] sm:$0xf]
    %v778 = vld [vmem:[%s769 + $0x20] sm:$0xf]
    %v779 = vld [vmem:[%s769 + $0x24] sm:$0xf]
    %v780 = vld [vmem:[%s769 + $0x28] sm:$0xf]
    %v781 = vld [vmem:[%s769 + $0x2c] sm:$0xf]
    %v782 = vld [vmem:[%s769 + $0x30] sm:$0xf]
    %v783 = vld [vmem:[%s769 + $0x34] sm:$0xf]
    %v784 = vld [vmem:[%s769 + $0x38] sm:$0xf]
    %v785 = vld [vmem:[%s769 + $0x3c] sm:$0xf]
    %v802 = vunpack.c.l.b16 %v770
    %v803 = vunpack.c.l.b16 %v771
    %v804 = vunpack.c.l.b16 %v772
    %v805 = vunpack.c.l.b16 %v773
    %v806 = vunpack.c.l.b16 %v774
    %v807 = vunpack.c.l.b16 %v775
    %v808 = vunpack.c.l.b16 %v776
    %v809 = vunpack.c.l.b16 %v777
    %v810 = vunpack.c.l.b16 %v778
    %v811 = vunpack.c.l.b16 %v779
    %v812 = vunpack.c.l.b16 %v780
    %v813 = vunpack.c.l.b16 %v781
    %v814 = vunpack.c.l.b16 %v782
    %v815 = vunpack.c.l.b16 %v783
    %v816 = vunpack.c.l.b16 %v784
    %v817 = vunpack.c.l.b16 %v785
    %v818 = vpack.c.b16 %v803, %v802
    %v819 = vpack.c.b16 %v805, %v804
    %v820 = vpack.c.b16 %v807, %v806
    %v821 = vpack.c.b16 %v809, %v808
    %v822 = vpack.c.b16 %v811, %v810
    %v823 = vpack.c.b16 %v813, %v812
    %v824 = vpack.c.b16 %v815, %v814
    %v825 = vpack.c.b16 %v817, %v816
    %834 = vmatpush.bf16.msra.mxu0 %v825
    %835 = vmatpush.bf16.msra.mxu0 %v824
    %836 = vmatpush.bf16.msra.mxu0 %v823
    %837 = vmatpush.bf16.msra.mxu0 %v822
    %838 = vmatpush.bf16.msra.mxu0 %v821
    %839 = vmatpush.bf16.msra.mxu0 %v820
    %840 = vmatpush.bf16.msra.mxu0 %v819
    %841 = vmatpush.bf16.msra.mxu0 %v818
    %842 = vmatmul.bf16.gmra.mxu0 %v767
    %v843 = vpop.f32.mrf.mxu0
    %v844 = vadd.f32 0.0, %v843
    %v845 = vpop.f32.mrf.mxu0
    %v846 = vadd.f32 0.0, %v845
    %847 = vmatmul.bf16.gmra.mxu0 %v768
    %v848 = vpop.f32.mrf.mxu0
    %v849 = vadd.f32 0.0, %v848
    %v850 = vpop.f32.mrf.mxu0
    %v851 = vadd.f32 0.0, %v850
    %852 = vdwg.mxu0
    %v853 = vadd.f32 %v743, %v844
    %v854 = vadd.f32 %v745, %v846
    %v855 = vadd.f32 %v748, %v849
    %v856 = vadd.f32 %v750, %v851
    %v857 = vld [vmem:[#allocation7 + $0x3] sm:$0x1]
    %v858 = vperm.slane %v857, 0
    %v859 = vadd.f32 %v853, %v858
    %v860 = vadd.f32 %v854, %v858
    %v861 = vadd.f32 %v855, %v858
    %v862 = vadd.f32 %v856, %v858
    %v863 = vmax.f32 %v859, 0.0
    %v864 = vmax.f32 %v860, 0.0
    %v865 = vmax.f32 %v861, 0.0
    %v866 = vmax.f32 %v862, 0.0
    %v869 = vrot.slane %v864, 6
    %v870 = vrot.slane %v866, 6
    %v875 = vrot.slane %v863, 6
    %v876 = vsel %vm569, %v875, %v869
    %v877 = vrot.slane %v865, 6
    %v878 = vsel %vm569, %v877, %v870
    %v883 = vsel %vm569, %v869, %v875
    %v884 = vsel %vm569, %v870, %v877
    %v885 = vpack.c.bf16 %v876, %v883
    %v886 = vpack.c.bf16 %v878, %v884
    %s887 = scalar_lea.vmem [#allocation5], 512
    %v888 = vld [vmem:[%s887] sm:$0xf]
    %v889 = vld [vmem:[%s887 + $0x4] sm:$0xf]
    %v890 = vld [vmem:[%s887 + $0x8] sm:$0xf]
    %v891 = vld [vmem:[%s887 + $0xc] sm:$0xf]
    %v892 = vld [vmem:[%s887 + $0x10] sm:$0xf]
    %v893 = vld [vmem:[%s887 + $0x14] sm:$0xf]
    %v894 = vld [vmem:[%s887 + $0x18] sm:$0xf]
    %v895 = vld [vmem:[%s887 + $0x1c] sm:$0xf]
    %v896 = vld [vmem:[%s887 + $0x20] sm:$0xf]
    %v897 = vld [vmem:[%s887 + $0x24] sm:$0xf]
    %v898 = vld [vmem:[%s887 + $0x28] sm:$0xf]
    %v899 = vld [vmem:[%s887 + $0x2c] sm:$0xf]
    %v900 = vld [vmem:[%s887 + $0x30] sm:$0xf]
    %v901 = vld [vmem:[%s887 + $0x34] sm:$0xf]
    %v902 = vld [vmem:[%s887 + $0x38] sm:$0xf]
    %v903 = vld [vmem:[%s887 + $0x3c] sm:$0xf]
    %v904 = vpack.c.bf16 %v864, %v863
    %v905 = vpack.c.bf16 %v866, %v865
    %s906 = scalar_lea.vmem [#allocation5], 576
    %v907 = vld [vmem:[%s906] sm:$0xf]
    %v908 = vld [vmem:[%s906 + $0x4] sm:$0xf]
    %v909 = vld [vmem:[%s906 + $0x8] sm:$0xf]
    %v910 = vld [vmem:[%s906 + $0xc] sm:$0xf]
    %v911 = vld [vmem:[%s906 + $0x10] sm:$0xf]
    %v912 = vld [vmem:[%s906 + $0x14] sm:$0xf]
    %v913 = vld [vmem:[%s906 + $0x18] sm:$0xf]
    %v914 = vld [vmem:[%s906 + $0x1c] sm:$0xf]
    %v915 = vld [vmem:[%s906 + $0x20] sm:$0xf]
    %v916 = vld [vmem:[%s906 + $0x24] sm:$0xf]
    %v917 = vld [vmem:[%s906 + $0x28] sm:$0xf]
    %v918 = vld [vmem:[%s906 + $0x2c] sm:$0xf]
    %v919 = vld [vmem:[%s906 + $0x30] sm:$0xf]
    %v920 = vld [vmem:[%s906 + $0x34] sm:$0xf]
    %v921 = vld [vmem:[%s906 + $0x38] sm:$0xf]
    %v922 = vld [vmem:[%s906 + $0x3c] sm:$0xf]
    %v939 = vunpack.c.l.b16 %v907
    %v940 = vunpack.c.l.b16 %v908
    %v941 = vunpack.c.l.b16 %v909
    %v942 = vunpack.c.l.b16 %v910
    %v943 = vunpack.c.l.b16 %v911
    %v944 = vunpack.c.l.b16 %v912
    %v945 = vunpack.c.l.b16 %v913
    %v946 = vunpack.c.l.b16 %v914
    %v947 = vunpack.c.l.b16 %v915
    %v948 = vunpack.c.l.b16 %v916
    %v949 = vunpack.c.l.b16 %v917
    %v950 = vunpack.c.l.b16 %v918
    %v951 = vunpack.c.l.b16 %v919
    %v952 = vunpack.c.l.b16 %v920
    %v953 = vunpack.c.l.b16 %v921
    %v954 = vunpack.c.l.b16 %v922
    %v955 = vpack.c.b16 %v940, %v939
    %v956 = vpack.c.b16 %v942, %v941
    %v957 = vpack.c.b16 %v944, %v943
    %v958 = vpack.c.b16 %v946, %v945
    %v959 = vpack.c.b16 %v948, %v947
    %v960 = vpack.c.b16 %v950, %v949
    %v961 = vpack.c.b16 %v952, %v951
    %v962 = vpack.c.b16 %v954, %v953
    %971 = vmatpush.bf16.msra.mxu0 %v962
    %972 = vmatpush.bf16.msra.mxu0 %v961
    %973 = vmatpush.bf16.msra.mxu0 %v960
    %974 = vmatpush.bf16.msra.mxu0 %v959
    %975 = vmatpush.bf16.msra.mxu0 %v958
    %976 = vmatpush.bf16.msra.mxu0 %v957
    %977 = vmatpush.bf16.msra.mxu0 %v956
    %978 = vmatpush.bf16.msra.mxu0 %v955
    %979 = vmatmul.bf16.gmra.mxu0 %v904
    %v980 = vpop.f32.mrf.mxu0
    %v981 = vadd.f32 0.0, %v980
    %v982 = vpop.f32.mrf.mxu0
    %v983 = vadd.f32 0.0, %v982
    %984 = vmatmul.bf16.gmra.mxu0 %v905
    %v985 = vpop.f32.mrf.mxu0
    %v986 = vadd.f32 0.0, %v985
    %v987 = vpop.f32.mrf.mxu0
    %v988 = vadd.f32 0.0, %v987
    %989 = vdwg.mxu0
    %v1006 = vunpack.c.l.b16 %v888
    %v1007 = vunpack.c.l.b16 %v889
    %v1008 = vunpack.c.l.b16 %v890
    %v1009 = vunpack.c.l.b16 %v891
    %v1010 = vunpack.c.l.b16 %v892
    %v1011 = vunpack.c.l.b16 %v893
    %v1012 = vunpack.c.l.b16 %v894
    %v1013 = vunpack.c.l.b16 %v895
    %v1014 = vunpack.c.l.b16 %v896
    %v1015 = vunpack.c.l.b16 %v897
    %v1016 = vunpack.c.l.b16 %v898
    %v1017 = vunpack.c.l.b16 %v899
    %v1018 = vunpack.c.l.b16 %v900
    %v1019 = vunpack.c.l.b16 %v901
    %v1020 = vunpack.c.l.b16 %v902
    %v1021 = vunpack.c.l.b16 %v903
    %v1022 = vpack.c.b16 %v1007, %v1006
    %v1023 = vpack.c.b16 %v1009, %v1008
    %v1024 = vpack.c.b16 %v1011, %v1010
    %v1025 = vpack.c.b16 %v1013, %v1012
    %v1026 = vpack.c.b16 %v1015, %v1014
    %v1027 = vpack.c.b16 %v1017, %v1016
    %v1028 = vpack.c.b16 %v1019, %v1018
    %v1029 = vpack.c.b16 %v1021, %v1020
    %1038 = vmatpush.bf16.msra.mxu0 %v1029
    %1039 = vmatpush.bf16.msra.mxu0 %v1028
    %1040 = vmatpush.bf16.msra.mxu0 %v1027
    %1041 = vmatpush.bf16.msra.mxu0 %v1026
    %1042 = vmatpush.bf16.msra.mxu0 %v1025
    %1043 = vmatpush.bf16.msra.mxu0 %v1024
    %1044 = vmatpush.bf16.msra.mxu0 %v1023
    %1045 = vmatpush.bf16.msra.mxu0 %v1022
    %1046 = vmatmul.bf16.gmra.mxu0 %v885
    %v1047 = vpop.f32.mrf.mxu0
    %v1048 = vadd.f32 %v981, %v1047
    %v1049 = vpop.f32.mrf.mxu0
    %v1050 = vadd.f32 %v983, %v1049
    %1051 = vmatmul.bf16.gmra.mxu0 %v886
    %v1052 = vpop.f32.mrf.mxu0
    %v1053 = vadd.f32 %v986, %v1052
    %v1054 = vpop.f32.mrf.mxu0
    %v1055 = vadd.f32 %v988, %v1054
    %1056 = vdwg.mxu0
    %v1057 = vrot.slane %v863, 2
    %v1058 = vrot.slane %v864, 2
    %v1059 = vsel %vm752, %v1057, %v1058
    %v1060 = vrot.slane %v865, 2
    %v1061 = vrot.slane %v866, 2
    %v1062 = vsel %vm752, %v1060, %v1061
    %v1069 = vsel %vm752, %v1058, %v1057
    %v1070 = vsel %vm752, %v1061, %v1060
    %v1071 = vpack.c.bf16 %v1069, %v1059
    %v1072 = vpack.c.bf16 %v1070, %v1062
    %s1073 = scalar_lea.vmem [#allocation5], 640
    %v1074 = vld [vmem:[%s1073] sm:$0xf]
    %v1075 = vld [vmem:[%s1073 + $0x4] sm:$0xf]
    %v1076 = vld [vmem:[%s1073 + $0x8] sm:$0xf]
    %v1077 = vld [vmem:[%s1073 + $0xc] sm:$0xf]
    %v1078 = vld [vmem:[%s1073 + $0x10] sm:$0xf]
    %v1079 = vld [vmem:[%s1073 + $0x14] sm:$0xf]
    %v1080 = vld [vmem:[%s1073 + $0x18] sm:$0xf]
    %v1081 = vld [vmem:[%s1073 + $0x1c] sm:$0xf]
    %v1082 = vld [vmem:[%s1073 + $0x20] sm:$0xf]
    %v1083 = vld [vmem:[%s1073 + $0x24] sm:$0xf]
    %v1084 = vld [vmem:[%s1073 + $0x28] sm:$0xf]
    %v1085 = vld [vmem:[%s1073 + $0x2c] sm:$0xf]
    %v1086 = vld [vmem:[%s1073 + $0x30] sm:$0xf]
    %v1087 = vld [vmem:[%s1073 + $0x34] sm:$0xf]
    %v1088 = vld [vmem:[%s1073 + $0x38] sm:$0xf]
    %v1089 = vld [vmem:[%s1073 + $0x3c] sm:$0xf]
    %v1106 = vunpack.c.l.b16 %v1074
    %v1107 = vunpack.c.l.b16 %v1075
    %v1108 = vunpack.c.l.b16 %v1076
    %v1109 = vunpack.c.l.b16 %v1077
    %v1110 = vunpack.c.l.b16 %v1078
    %v1111 = vunpack.c.l.b16 %v1079
    %v1112 = vunpack.c.l.b16 %v1080
    %v1113 = vunpack.c.l.b16 %v1081
    %v1114 = vunpack.c.l.b16 %v1082
    %v1115 = vunpack.c.l.b16 %v1083
    %v1116 = vunpack.c.l.b16 %v1084
    %v1117 = vunpack.c.l.b16 %v1085
    %v1118 = vunpack.c.l.b16 %v1086
    %v1119 = vunpack.c.l.b16 %v1087
    %v1120 = vunpack.c.l.b16 %v1088
    %v1121 = vunpack.c.l.b16 %v1089
    %v1122 = vpack.c.b16 %v1107, %v1106
    %v1123 = vpack.c.b16 %v1109, %v1108
    %v1124 = vpack.c.b16 %v1111, %v1110
    %v1125 = vpack.c.b16 %v1113, %v1112
    %v1126 = vpack.c.b16 %v1115, %v1114
    %v1127 = vpack.c.b16 %v1117, %v1116
    %v1128 = vpack.c.b16 %v1119, %v1118
    %v1129 = vpack.c.b16 %v1121, %v1120
    %1138 = vmatpush.bf16.msra.mxu0 %v1129
    %1139 = vmatpush.bf16.msra.mxu0 %v1128
    %1140 = vmatpush.bf16.msra.mxu0 %v1127
    %1141 = vmatpush.bf16.msra.mxu0 %v1126
    %1142 = vmatpush.bf16.msra.mxu0 %v1125
    %1143 = vmatpush.bf16.msra.mxu0 %v1124
    %1144 = vmatpush.bf16.msra.mxu0 %v1123
    %1145 = vmatpush.bf16.msra.mxu0 %v1122
    %1146 = vmatmul.bf16.gmra.mxu0 %v1071
    %v1147 = vpop.f32.mrf.mxu0
    %v1148 = vadd.f32 0.0, %v1147
    %v1149 = vpop.f32.mrf.mxu0
    %v1150 = vadd.f32 0.0, %v1149
    %1151 = vmatmul.bf16.gmra.mxu0 %v1072
    %v1152 = vpop.f32.mrf.mxu0
    %v1153 = vadd.f32 0.0, %v1152
    %v1154 = vpop.f32.mrf.mxu0
    %v1155 = vadd.f32 0.0, %v1154
    %1156 = vdwg.mxu0
    %v1157 = vadd.f32 %v1048, %v1148
    %v1158 = vadd.f32 %v1050, %v1150
    %v1159 = vadd.f32 %v1053, %v1153
    %v1160 = vadd.f32 %v1055, %v1155
    %v1161 = vld [vmem:[#allocation7 + $0x4] sm:$0x1]
    %v1162 = vperm.slane %v1161, 0
    %v1163 = vadd.f32 %v1157, %v1162
    %v1164 = vadd.f32 %v1158, %v1162
    %v1165 = vadd.f32 %v1159, %v1162
    %v1166 = vadd.f32 %v1160, %v1162
    %v1167 = vmax.f32 %v1163, 0.0
    %v1168 = vmax.f32 %v1164, 0.0
    %v1169 = vmax.f32 %v1165, 0.0
    %v1170 = vmax.f32 %v1166, 0.0
    %v1171 = vadd.f32 %v1167, %v557
    %v1172 = vadd.f32 %v1168, %v558
    %v1173 = vadd.f32 %v1169, %v559
    %v1174 = vadd.f32 %v1170, %v560
    %v1175 = vadd.f32 %v1171, %v1172
    %v1176 = vrot.slane %v1175, 4
    %v1177 = vadd.f32 %v1175, %v1176
    %v1178 = vrot.slane %v1177, 2
    %v1179 = vadd.f32 %v1177, %v1178
    %v1180 = vrot.slane %v1179, 1
    %v1181 = vadd.f32 %v1179, %v1180
    %v1182 = vadd.f32 %v1173, %v1174
    %v1183 = vrot.slane %v1182, 4
    %v1184 = vadd.f32 %v1182, %v1183
    %v1185 = vrot.slane %v1184, 2
    %v1186 = vadd.f32 %v1184, %v1185
    %v1187 = vrot.slane %v1186, 1
    %v1188 = vadd.f32 %v1186, %v1187
    %v1189 = vmul.f32 %v1181, 0.0625
    %v1190 = vmul.f32 %v1188, 0.0625
    %v1191 = vpack.c.bf16 %v1189, %v1189
    %v1192 = vpack.c.bf16 %v1190, %v1190
    %s1193 = scalar_lea.vmem [#allocation5], 704
    %v1194 = vld [vmem:[%s1193] sm:$0xf]
    %v1195 = vld [vmem:[%s1193 + $0x4] sm:$0xf]
    %v1196 = vld [vmem:[%s1193 + $0x8] sm:$0xf]
    %v1197 = vld [vmem:[%s1193 + $0xc] sm:$0xf]
    %v1198 = vld [vmem:[%s1193 + $0x10] sm:$0xf]
    %v1199 = vld [vmem:[%s1193 + $0x14] sm:$0xf]
    %v1200 = vld [vmem:[%s1193 + $0x18] sm:$0xf]
    %v1201 = vld [vmem:[%s1193 + $0x1c] sm:$0xf]
    %v1202 = vld [vmem:[%s1193 + $0x20] sm:$0xf]
    %v1203 = vld [vmem:[%s1193 + $0x24] sm:$0xf]
    %v1204 = vld [vmem:[%s1193 + $0x28] sm:$0xf]
    %v1205 = vld [vmem:[%s1193 + $0x2c] sm:$0xf]
    %v1206 = vld [vmem:[%s1193 + $0x30] sm:$0xf]
    %v1207 = vld [vmem:[%s1193 + $0x34] sm:$0xf]
    %v1208 = vld [vmem:[%s1193 + $0x38] sm:$0xf]
    %v1209 = vld [vmem:[%s1193 + $0x3c] sm:$0xf]
    %v1210 = vld [vmem:[#allocation7 + $0x5] sm:$0x1]
    %v1211 = vperm.slane %v1210, 0
    %v1214 = vunpack.c.l.b16 %v1191
    %v1215 = vunpack.c.l.b16 %v1192
    %vm1216 = vcmask 1041409
    %v1217 = vsel %vm1216, %v1215, %v1214
    %v1218 = vpack.c.b16 %v1217, %v1217
    %v1236 = vunpack.c.l.b16 %v1194
    %v1237 = vunpack.c.l.b16 %v1195
    %v1238 = vunpack.c.l.b16 %v1196
    %v1239 = vunpack.c.l.b16 %v1197
    %v1240 = vunpack.c.l.b16 %v1198
    %v1241 = vunpack.c.l.b16 %v1199
    %v1242 = vunpack.c.l.b16 %v1200
    %v1243 = vunpack.c.l.b16 %v1201
    %v1244 = vunpack.c.l.b16 %v1202
    %v1245 = vunpack.c.l.b16 %v1203
    %v1246 = vunpack.c.l.b16 %v1204
    %v1247 = vunpack.c.l.b16 %v1205
    %v1248 = vunpack.c.l.b16 %v1206
    %v1249 = vunpack.c.l.b16 %v1207
    %v1250 = vunpack.c.l.b16 %v1208
    %v1251 = vunpack.c.l.b16 %v1209
    %v1252 = vpack.c.b16 %v1237, %v1236
    %v1253 = vpack.c.b16 %v1239, %v1238
    %v1254 = vpack.c.b16 %v1241, %v1240
    %v1255 = vpack.c.b16 %v1243, %v1242
    %v1256 = vpack.c.b16 %v1245, %v1244
    %v1257 = vpack.c.b16 %v1247, %v1246
    %v1258 = vpack.c.b16 %v1249, %v1248
    %v1259 = vpack.c.b16 %v1251, %v1250
    %1268 = vmatpush.bf16.msra.mxu0 %v1259
    %1269 = vmatpush.bf16.msra.mxu0 %v1258
    %1270 = vmatpush.bf16.msra.mxu0 %v1257
    %1271 = vmatpush.bf16.msra.mxu0 %v1256
    %1272 = vmatpush.bf16.msra.mxu0 %v1255
    %1273 = vmatpush.bf16.msra.mxu0 %v1254
    %1274 = vmatpush.bf16.msra.mxu0 %v1253
    %1275 = vmatpush.bf16.msra.mxu0 %v1252
    %1276 = vmatmul.bf16.gmra.mxu0 %v1218
    %v1277 = vpop.f32.mrf.mxu0
    %v1278 = vadd.f32 %v1211, %v1277
    %v1279 = vpop.f32.mrf.mxu0
    %1280 = vdwg.mxu0
    %1281 = vst [vmem:[#allocation8] sm:$0x3] %v1278
    // Predicated region
    $region26: #{tpu_custom_call.1} parent=1 // pred_check
      _
    $region27: #{tpu_custom_call.1} parent=1 // pred_check_branch
      %1283 = sbr.rel (0) target = $region29
    $region28: #{tpu_custom_call.1} parent=1 // pred_region
      %1285 = vsyncadd [#allocation4], 0
      %s1287 = sshll.u32 [#allocation8], 4
      %s1288 = int_to_ptr.vmem [resolvable:$true] %s1287
      %s1289 = sshll.u32 %s3, 4
      %s1290 = int_to_ptr.hbm [resolvable:$true] %s1289
      %1292 = dma.vmem_to_hbm [thread:$0]  %s1288, 32, %s1290, [#allocation4]
    $region29: #{tpu_custom_call.1} parent=1 // pred_fallthru
      _
    // Predicated region
    $region30: #{tpu_custom_call.1} parent=1 // pred_check
      _
    $region31: #{tpu_custom_call.1} parent=1 // pred_check_branch
      %1294 = sbr.rel (0) target = $region33
    $region32: #{tpu_custom_call.1} parent=1 // pred_region
      %1296 = dma.done [#allocation4], 32
    $region33: #{tpu_custom_call.1} parent=1 // pred_fallthru
      _
    %1297 = vsyncpa [#allocation3], 1
    %1298 = vsyncpa [#allocation6], 1
    %1299 = vsyncpa [#allocation4], 1

</llo_original>
